<compile_context>
chip_gen: v6e
topology: v6e:2x2x1
jax: 0.10.0
libtpu: 0.0.40
codegen_flags: <defaults>
</compile_context>

<pallas_src>
import numpy as np
import jax
import jax.numpy as jnp
from jax.experimental import pallas as pl
from jax.experimental.pallas import tpu as pltpu

NUM_CLASSES = 3
NUM_DIFFUSION_STEPS = 1000


# ----------------------------------------------------------------------------
# Diffusion schedule glue (matches get_named_beta_schedule('linear', 1000) and
# GaussianDiffusion precomputation; SpacedDiffusion keeping all 1000 steps is
# numerically identical to the base schedule for q_sample).
# ----------------------------------------------------------------------------
def linear_beta_schedule(num_steps: int) -> np.ndarray:
    scale = 1000.0 / num_steps
    beta_start = scale * 0.0001
    beta_end = scale * 0.02
    return np.linspace(beta_start, beta_end, num_steps, dtype=np.float64)


def make_q_sample_coeffs(num_steps: int):
    betas = linear_beta_schedule(num_steps)
    alphas_cumprod = np.cumprod(1.0 - betas, axis=0)
    sqrt_ac = np.sqrt(alphas_cumprod).astype(np.float32)          # sqrt(alpha_bar_t)
    sqrt_1mac = np.sqrt(1.0 - alphas_cumprod).astype(np.float32)  # sqrt(1 - alpha_bar_t)
    return jnp.asarray(sqrt_ac), jnp.asarray(sqrt_1mac)


# ----------------------------------------------------------------------------
# Pallas kernel: out = a_col * x + s_col * noise, with (rows, 1) coefficient
# columns lane-broadcast against (rows, LANE) data tiles.
# ----------------------------------------------------------------------------
def q_sample_kernel(a_ref, s_ref, x_ref, noise_ref, out_ref):
    out_ref[...] = a_ref[...] * x_ref[...] + s_ref[...] * noise_ref[...]


_LANE_CANDIDATES = (2048, 1024, 512, 256, 128)
_SMALL_FALLBACK_BYTES = 64 * 1024       # below this, XLA's fused elementwise wins
_PER_STREAM_TILE_BYTES = 4 << 20        # 4 MiB/stream; 3 streams x 2 bufs = 24 MiB


def _choose_lane(total: int):
    """Widest lane count (multiple of 128) that exactly divides the per-sample size."""
    for cand in _LANE_CANDIDATES:
        if total % cand == 0:
            return cand
    return None


def q_sample_pallas(x, noise, sqrt_ac_t, sqrt_1mac_t):
    """x, noise: (B, C, H, W) float32 (NCHW). sqrt_*_t: (B,) float32 per-sample coeffs."""
    orig_shape = x.shape
    B = x.shape[0]
    total = int(np.prod(x.shape[1:]))
    elem_bytes = jnp.dtype(x.dtype).itemsize
    lane = _choose_lane(total)

    # Fallback: lane-unaligned per-sample size (would need pad copies, 2-3x HBM
    # traffic) or tiny tensors (launch overhead > data movement). Plain fused XLA
    # is already at roofline there and is numerically identical.
    if lane is None or B * total * elem_bytes < _SMALL_FALLBACK_BYTES:
        bshape = (B,) + (1,) * (x.ndim - 1)
        return sqrt_ac_t.reshape(bshape) * x + sqrt_1mac_t.reshape(bshape) * noise

    rows_per_batch = total // lane
    total_rows = B * rows_per_batch

    # Flatten batch into rows: every row belongs to exactly one batch element,
    # so per-row coefficient columns (total_rows, 1) carry the per-sample scalars.
    x2 = x.reshape(total_rows, lane)
    n2 = noise.reshape(total_rows, lane)
    a_col = jnp.repeat(sqrt_ac_t, rows_per_batch).reshape(total_rows, 1)
    s_col = jnp.repeat(sqrt_1mac_t, rows_per_batch).reshape(total_rows, 1)

    # Row tiling: biggest tile that fits the per-stream budget.
    max_rows = max(8, _PER_STREAM_TILE_BYTES // (lane * elem_bytes))
    if total_rows <= max_rows:
        row_tile = total_rows            # full dim -> always a legal block shape
    else:
        row_tile = (max_rows // 8) * 8   # multiple of 8; last block may be partial
    num_row_tiles = -(-total_rows // row_tile)

    data_block = (row_tile, lane)
    coef_block = (row_tile, 1)
    idx = lambda r: (r, 0)

    out = pl.pallas_call(
        q_sample_kernel,
        out_shape=jax.ShapeDtypeStruct((total_rows, lane), x.dtype),
        grid=(num_row_tiles,),
        in_specs=[
            pl.BlockSpec(coef_block, idx),   # a_col
            pl.BlockSpec(coef_block, idx),   # s_col
            pl.BlockSpec(data_block, idx),   # x tile
            pl.BlockSpec(data_block, idx),   # noise tile
        ],
        out_specs=pl.BlockSpec(data_block, idx),
        compiler_params=pltpu.CompilerParams(
            dimension_semantics=("parallel",),
            vmem_limit_bytes=48 * 1024 * 1024,   # <= v7x 64 MiB physical; > v5e 16 MiB default
        ),
    )(a_col, s_col, x2, n2)

    return out.reshape(orig_shape)


# ----------------------------------------------------------------------------
# DiffSFCT.forward(pred_type='q_sample') equivalent
# ----------------------------------------------------------------------------
def diffsfct_q_sample(x, key):
    """Returns (x_t, t, noise), mirroring the PyTorch forward for pred_type='q_sample'."""
    k_noise, k_t = jax.random.split(key)
    noise = jax.random.normal(k_noise, x.shape, dtype=x.dtype)            # torch.randn_like(x)
    t = jax.random.randint(k_t, (x.shape[0],), 0, NUM_DIFFUSION_STEPS)    # UniformSampler.sample
    # (UniformSampler also returns weights == 1.0, which forward() discards.)

    sqrt_ac, sqrt_1mac = make_q_sample_coeffs(NUM_DIFFUSION_STEPS)
    sqrt_ac_t = jnp.take(sqrt_ac, t).astype(jnp.float32)       # (B,)
    sqrt_1mac_t = jnp.take(sqrt_1mac, t).astype(jnp.float32)   # (B,)

    x_t = q_sample_pallas(x, noise, sqrt_ac_t, sqrt_1mac_t)
    return x_t, t, noise


def _reference_q_sample(x, t, noise):
    sqrt_ac, sqrt_1mac = make_q_sample_coeffs(NUM_DIFFUSION_STEPS)
    bshape = (x.shape[0],) + (1,) * (x.ndim - 1)
    a = jnp.take(sqrt_ac, t).reshape(bshape)
    s = jnp.take(sqrt_1mac, t).reshape(bshape)
    return a * x + s * noise


if __name__ == "__main__":
    key = jax.random.PRNGKey(0)
    k_x1, k_fwd1, k_x2, k_fwd2 = jax.random.split(key, 4)

    # 1) Shape large enough to take the Pallas path (C*H*W = 12288 = 6 * 2048).
    B, C, H, W = 2, NUM_CLASSES, 64, 64
    x = jax.random.uniform(k_x1, (B, C, H, W), dtype=jnp.float32)
    x_t, t, noise = diffsfct_q_sample(x, k_fwd1)
    jax.block_until_ready(x_t)
    ref = _reference_q_sample(x, t, noise)
    assert jnp.allclose(x_t, ref, atol=1e-6, rtol=1e-6), "mismatch vs reference q_sample (pallas path)"

    # 2) Tiny label volume: exercises the small-tensor fallback path.
    xs = jax.random.uniform(k_x2, (2, NUM_CLASSES, 16, 16), dtype=jnp.float32)
    xs_t, ts, ns = diffsfct_q_sample(xs, k_fwd2)
    jax.block_until_ready(xs_t)
    refs = _reference_q_sample(xs, ts, ns)
    assert jnp.allclose(xs_t, refs, atol=1e-6, rtol=1e-6), "mismatch vs reference q_sample (fallback path)"

    print("KERNEL_OK")
</pallas_src>

<mosaic_0001>
module attributes {stable_mosaic.version = 11 : i64} {
  func.func @q_sample_kernel(%arg0: i32, %arg1: memref<12x1xf32, #tpu.memory_space<vmem>>, %arg2: memref<12x1xf32, #tpu.memory_space<vmem>>, %arg3: memref<12x2048xf32, #tpu.memory_space<vmem>>, %arg4: memref<12x2048xf32, #tpu.memory_space<vmem>>, %arg5: memref<12x2048xf32, #tpu.memory_space<vmem>>) attributes {dimension_semantics = [#tpu.dimension_semantics<parallel>], iteration_bounds = array<i64: 1>, scalar_prefetch = 0 : i64, scratch_operands = 0 : i64, tpu.core_type = #tpu.core_type<tc>, window_params = [{transform_indices = @transform_0, window_bounds = array<i64: 12, 1>}, {transform_indices = @transform_1, window_bounds = array<i64: 12, 1>}, {transform_indices = @transform_2, window_bounds = array<i64: 12, 2048>}, {transform_indices = @transform_3, window_bounds = array<i64: 12, 2048>}, {transform_indices = @transform_4, window_bounds = array<i64: 12, 2048>}]} {
    %c0 = arith.constant 0 : index
    %c0_0 = arith.constant 0 : index
    %0 = vector.load %arg1[%c0, %c0_0] : memref<12x1xf32, #tpu.memory_space<vmem>>, vector<12x1xf32>
    %c0_1 = arith.constant 0 : index
    %c0_2 = arith.constant 0 : index
    %1 = vector.load %arg3[%c0_1, %c0_2] : memref<12x2048xf32, #tpu.memory_space<vmem>>, vector<12x2048xf32>
    %2 = vector.broadcast %0 : vector<12x1xf32> to vector<12x2048xf32>
    %3 = arith.mulf %2, %1 : vector<12x2048xf32>
    %c0_3 = arith.constant 0 : index
    %c0_4 = arith.constant 0 : index
    %4 = vector.load %arg2[%c0_3, %c0_4] : memref<12x1xf32, #tpu.memory_space<vmem>>, vector<12x1xf32>
    %c0_5 = arith.constant 0 : index
    %c0_6 = arith.constant 0 : index
    %5 = vector.load %arg4[%c0_5, %c0_6] : memref<12x2048xf32, #tpu.memory_space<vmem>>, vector<12x2048xf32>
    %6 = vector.broadcast %4 : vector<12x1xf32> to vector<12x2048xf32>
    %7 = arith.mulf %6, %5 : vector<12x2048xf32>
    %8 = arith.addf %3, %7 : vector<12x2048xf32>
    %c0_7 = arith.constant 0 : index
    %c0_8 = arith.constant 0 : index
    %9 = vector.load %arg5[%c0_7, %c0_8] : memref<12x2048xf32, #tpu.memory_space<vmem>>, vector<12x2048xf32>
    tpu.vector_store %arg5[%c0_7, %c0_8], %8 {strides = array<i32>} : memref<12x2048xf32, #tpu.memory_space<vmem>>, vector<12x2048xf32>,
    return
  }
  func.func @transform_0(%arg0: i32) -> (i32, i32) {
    %c0_i32 = arith.constant 0 : i32
    %c0_i32_0 = arith.constant 0 : i32
    return %arg0, %c0_i32 : i32, i32
  }
  func.func @transform_1(%arg0: i32) -> (i32, i32) {
    %c0_i32 = arith.constant 0 : i32
    %c0_i32_0 = arith.constant 0 : i32
    return %arg0, %c0_i32 : i32, i32
  }
  func.func @transform_2(%arg0: i32) -> (i32, i32) {
    %c0_i32 = arith.constant 0 : i32
    %c0_i32_0 = arith.constant 0 : i32
    return %arg0, %c0_i32 : i32, i32
  }
  func.func @transform_3(%arg0: i32) -> (i32, i32) {
    %c0_i32 = arith.constant 0 : i32
    %c0_i32_0 = arith.constant 0 : i32
    return %arg0, %c0_i32 : i32, i32
  }
  func.func @transform_4(%arg0: i32) -> (i32, i32) {
    %c0_i32 = arith.constant 0 : i32
    %c0_i32_0 = arith.constant 0 : i32
    return %arg0, %c0_i32 : i32, i32
  }
}

</mosaic_0001>

<llo_original>
// kernel: tpu_custom_call.1
$region0: #{tpu_custom_call.1}
  #allocation0 [shape = 'u32[]', space=smem, size = 0x4, offset = 0x4, fixed_abs, tag = 'smem constant byte address 0x4 - core index']
  #allocation1 [shape = 'u32[144,128]{1,0:T(1,128)}', space=vmem, size = 0x12000, scoped, tag = 'internal scratch']
  %s0 = inlined_call_operand.vmem [shape: f32[12,1], index: 0, kind: input, shape index: {}]
  %s1 = inlined_call_operand.vmem [shape: f32[12,1], index: 1, kind: input, shape index: {}]
  %s2 = inlined_call_operand.hbm [shape: f32[12,2048], index: 2, kind: input, shape index: {}]
  %s3 = inlined_call_operand.hbm [shape: f32[12,2048], index: 3, kind: input, shape index: {}]
  %s4 = inlined_call_operand.hbm [shape: f32[12,2048], index: 4, kind: output, shape index: {}]
  %s5 = sld [smem:[#allocation0]]
  $region34: #{tpu_custom_call.1} parent=0
    _
  %s7 = ssub.s32 1, %s5
  %s8 = scalar_select 0, %s7, %s5
  $region1: #{tpu_custom_call.1} parent=0
    #allocation2 [shape = 'u8[131072]{0}', space=vmem, size = 0x20000, scoped, tag = 'input window, operand 2, single buffered']
    #allocation3 [shape = 's32[1]{0}', space=sflag, size = 0x4, scoped, tag = 'scoped memory for tpu_custom_call.1']
    #allocation4 [shape = 's32[1]{0}', space=sflag, size = 0x4, scoped, tag = 'scoped memory for tpu_custom_call.1']
    #allocation5 [shape = 'u8[131072]{0}', space=vmem, size = 0x20000, scoped, tag = 'input window, operand 3, single buffered']
    #allocation6 [shape = 's32[1]{0}', space=sflag, size = 0x4, scoped, tag = 'scoped memory for tpu_custom_call.1']
    #allocation7 [shape = 'u8[131072]{0}', space=vmem, size = 0x20000, scoped, tag = 'output window, operand 0, single buffered']
    %9 = vsyncpa [#allocation3], 0
    %10 = vsyncpa [#allocation6], 0
    %11 = vsyncpa [#allocation4], 0
    // Predicated region
    $region2: #{tpu_custom_call.1} parent=1 // pred_check
      _
    $region3: #{tpu_custom_call.1} parent=1 // pred_check_branch
      %13 = sbr.rel (0) target = $region5
    $region4: #{tpu_custom_call.1} parent=1 // pred_region
      _
    $region5: #{tpu_custom_call.1} parent=1 // pred_fallthru
      _
    // Predicated region
    $region6: #{tpu_custom_call.1} parent=1 // pred_check
      _
    $region7: #{tpu_custom_call.1} parent=1 // pred_check_branch
      %15 = sbr.rel (0) target = $region9
    $region8: #{tpu_custom_call.1} parent=1 // pred_region
      _
    $region9: #{tpu_custom_call.1} parent=1 // pred_fallthru
      _
    // Predicated region
    $region10: #{tpu_custom_call.1} parent=1 // pred_check
      _
    $region11: #{tpu_custom_call.1} parent=1 // pred_check_branch
      %17 = sbr.rel (0) target = $region13
    $region12: #{tpu_custom_call.1} parent=1 // pred_region
      %s19 = ssub.s32 4096, 4096
      %20 = vsyncadd [#allocation3], %s19
      %s21 = sshll.u32 [#allocation2], 4
      %s22 = int_to_ptr.vmem [resolvable:$true] %s21
      %27 = dma.hbm_to_vmem [thread:$0]  %s2, 4096, %s22, [#allocation3], 2048, 2048, 128
    $region13: #{tpu_custom_call.1} parent=1 // pred_fallthru
      _
    // Predicated region
    $region14: #{tpu_custom_call.1} parent=1 // pred_check
      _
    $region15: #{tpu_custom_call.1} parent=1 // pred_check_branch
      %29 = sbr.rel (0) target = $region17
    $region16: #{tpu_custom_call.1} parent=1 // pred_region
      %s31 = ssub.s32 4096, 4096
      %32 = vsyncadd [#allocation6], %s31
      %s33 = sshll.u32 [#allocation5], 4
      %s34 = int_to_ptr.vmem [resolvable:$true] %s33
      %39 = dma.hbm_to_vmem [thread:$0]  %s3, 4096, %s34, [#allocation6], 2048, 2048, 128
    $region17: #{tpu_custom_call.1} parent=1 // pred_fallthru
      _
    // Predicated region
    $region18: #{tpu_custom_call.1} parent=1 // pred_check
      _
    $region19: #{tpu_custom_call.1} parent=1 // pred_check_branch
      %41 = sbr.rel (0) target = $region21
    $region20: #{tpu_custom_call.1} parent=1 // pred_region
      %42 = dma.done [#allocation3], 4096
    $region21: #{tpu_custom_call.1} parent=1 // pred_fallthru
      _
    // Predicated region
    $region22: #{tpu_custom_call.1} parent=1 // pred_check
      _
    $region23: #{tpu_custom_call.1} parent=1 // pred_check_branch
      %44 = sbr.rel (0) target = $region25
    $region24: #{tpu_custom_call.1} parent=1 // pred_region
      %45 = dma.done [#allocation6], 4096
    $region25: #{tpu_custom_call.1} parent=1 // pred_fallthru
      _
    %v46 = vld [vmem:[%s0] sm:$0xff]
    %v47 = vld [vmem:[%s0 + $0x8] sm:$0xf]
    %v48 = vld [vmem:[#allocation2] sm:$0xff]
    %v49 = vld [vmem:[#allocation2 + $0x8] sm:$0xff]
    %v50 = vld [vmem:[#allocation2 + $0x10] sm:$0xff]
    %v51 = vld [vmem:[#allocation2 + $0x18] sm:$0xff]
    %v52 = vld [vmem:[#allocation2 + $0x20] sm:$0xff]
    %v53 = vld [vmem:[#allocation2 + $0x28] sm:$0xff]
    %v54 = vld [vmem:[#allocation2 + $0x30] sm:$0xff]
    %v55 = vld [vmem:[#allocation2 + $0x38] sm:$0xff]
    %v56 = vld [vmem:[#allocation2 + $0x40] sm:$0xff]
    %v57 = vld [vmem:[#allocation2 + $0x48] sm:$0xff]
    %v58 = vld [vmem:[#allocation2 + $0x50] sm:$0xff]
    %v59 = vld [vmem:[#allocation2 + $0x58] sm:$0xff]
    %v60 = vld [vmem:[#allocation2 + $0x60] sm:$0xff]
    %v61 = vld [vmem:[#allocation2 + $0x68] sm:$0xff]
    %v62 = vld [vmem:[#allocation2 + $0x70] sm:$0xff]
    %v63 = vld [vmem:[#allocation2 + $0x78] sm:$0xff]
    %v64 = vld [vmem:[#allocation2 + $0x80] sm:$0xf]
    %v65 = vld [vmem:[#allocation2 + $0x88] sm:$0xf]
    %v66 = vld [vmem:[#allocation2 + $0x90] sm:$0xf]
    %v67 = vld [vmem:[#allocation2 + $0x98] sm:$0xf]
    %v68 = vld [vmem:[#allocation2 + $0xa0] sm:$0xf]
    %v69 = vld [vmem:[#allocation2 + $0xa8] sm:$0xf]
    %v70 = vld [vmem:[#allocation2 + $0xb0] sm:$0xf]
    %v71 = vld [vmem:[#allocation2 + $0xb8] sm:$0xf]
    %v72 = vld [vmem:[#allocation2 + $0xc0] sm:$0xf]
    %v73 = vld [vmem:[#allocation2 + $0xc8] sm:$0xf]
    %v74 = vld [vmem:[#allocation2 + $0xd0] sm:$0xf]
    %v75 = vld [vmem:[#allocation2 + $0xd8] sm:$0xf]
    %v76 = vld [vmem:[#allocation2 + $0xe0] sm:$0xf]
    %v77 = vld [vmem:[#allocation2 + $0xe8] sm:$0xf]
    %v78 = vld [vmem:[#allocation2 + $0xf0] sm:$0xf]
    %v79 = vld [vmem:[#allocation2 + $0xf8] sm:$0xf]
    %81 = vset.pattern.permute.xlu0 0
    %82 = vperm.xlu0 %81, %v46
    %v83 = vpop.permute.xlu0 %82
    %86 = vset.pattern.permute.xlu0 0
    %87 = vperm.xlu0 %86, %v47
    %v88 = vpop.permute.xlu0 %87
    %v90 = vmul.f32 %v83, %v48
    %v91 = vmul.f32 %v83, %v49
    %v92 = vmul.f32 %v83, %v50
    %v93 = vmul.f32 %v83, %v51
    %v94 = vmul.f32 %v83, %v52
    %v95 = vmul.f32 %v83, %v53
    %v96 = vmul.f32 %v83, %v54
    %v97 = vmul.f32 %v83, %v55
    %v98 = vmul.f32 %v83, %v56
    %v99 = vmul.f32 %v83, %v57
    %v100 = vmul.f32 %v83, %v58
    %v101 = vmul.f32 %v83, %v59
    %v102 = vmul.f32 %v83, %v60
    %v103 = vmul.f32 %v83, %v61
    %v104 = vmul.f32 %v83, %v62
    %v105 = vmul.f32 %v83, %v63
    %v106 = vmul.f32 %v88, %v64
    %v107 = vmul.f32 %v88, %v65
    %v108 = vmul.f32 %v88, %v66
    %v109 = vmul.f32 %v88, %v67
    %v110 = vmul.f32 %v88, %v68
    %v111 = vmul.f32 %v88, %v69
    %v112 = vmul.f32 %v88, %v70
    %v113 = vmul.f32 %v88, %v71
    %v114 = vmul.f32 %v88, %v72
    %v115 = vmul.f32 %v88, %v73
    %v116 = vmul.f32 %v88, %v74
    %v117 = vmul.f32 %v88, %v75
    %v118 = vmul.f32 %v88, %v76
    %v119 = vmul.f32 %v88, %v77
    %v120 = vmul.f32 %v88, %v78
    %v121 = vmul.f32 %v88, %v79
    %v122 = vld [vmem:[%s1] sm:$0xff]
    %v123 = vld [vmem:[%s1 + $0x8] sm:$0xf]
    %v124 = vld [vmem:[#allocation5] sm:$0xff]
    %v125 = vld [vmem:[#allocation5 + $0x8] sm:$0xff]
    %v126 = vld [vmem:[#allocation5 + $0x10] sm:$0xff]
    %v127 = vld [vmem:[#allocation5 + $0x18] sm:$0xff]
    %v128 = vld [vmem:[#allocation5 + $0x20] sm:$0xff]
    %v129 = vld [vmem:[#allocation5 + $0x28] sm:$0xff]
    %v130 = vld [vmem:[#allocation5 + $0x30] sm:$0xff]
    %v131 = vld [vmem:[#allocation5 + $0x38] sm:$0xff]
    %v132 = vld [vmem:[#allocation5 + $0x40] sm:$0xff]
    %v133 = vld [vmem:[#allocation5 + $0x48] sm:$0xff]
    %v134 = vld [vmem:[#allocation5 + $0x50] sm:$0xff]
    %v135 = vld [vmem:[#allocation5 + $0x58] sm:$0xff]
    %v136 = vld [vmem:[#allocation5 + $0x60] sm:$0xff]
    %v137 = vld [vmem:[#allocation5 + $0x68] sm:$0xff]
    %v138 = vld [vmem:[#allocation5 + $0x70] sm:$0xff]
    %v139 = vld [vmem:[#allocation5 + $0x78] sm:$0xff]
    %v140 = vld [vmem:[#allocation5 + $0x80] sm:$0xf]
    %v141 = vld [vmem:[#allocation5 + $0x88] sm:$0xf]
    %v142 = vld [vmem:[#allocation5 + $0x90] sm:$0xf]
    %v143 = vld [vmem:[#allocation5 + $0x98] sm:$0xf]
    %v144 = vld [vmem:[#allocation5 + $0xa0] sm:$0xf]
    %v145 = vld [vmem:[#allocation5 + $0xa8] sm:$0xf]
    %v146 = vld [vmem:[#allocation5 + $0xb0] sm:$0xf]
    %v147 = vld [vmem:[#allocation5 + $0xb8] sm:$0xf]
    %v148 = vld [vmem:[#allocation5 + $0xc0] sm:$0xf]
    %v149 = vld [vmem:[#allocation5 + $0xc8] sm:$0xf]
    %v150 = vld [vmem:[#allocation5 + $0xd0] sm:$0xf]
    %v151 = vld [vmem:[#allocation5 + $0xd8] sm:$0xf]
    %v152 = vld [vmem:[#allocation5 + $0xe0] sm:$0xf]
    %v153 = vld [vmem:[#allocation5 + $0xe8] sm:$0xf]
    %v154 = vld [vmem:[#allocation5 + $0xf0] sm:$0xf]
    %v155 = vld [vmem:[#allocation5 + $0xf8] sm:$0xf]
    %157 = vset.pattern.permute.xlu0 0
    %158 = vperm.xlu0 %157, %v122
    %v159 = vpop.permute.xlu0 %158
    %162 = vset.pattern.permute.xlu0 0
    %163 = vperm.xlu0 %162, %v123
    %v164 = vpop.permute.xlu0 %163
    %v166 = vmul.f32 %v159, %v124
    %v167 = vmul.f32 %v159, %v125
    %v168 = vmul.f32 %v159, %v126
    %v169 = vmul.f32 %v159, %v127
    %v170 = vmul.f32 %v159, %v128
    %v171 = vmul.f32 %v159, %v129
    %v172 = vmul.f32 %v159, %v130
    %v173 = vmul.f32 %v159, %v131
    %v174 = vmul.f32 %v159, %v132
    %v175 = vmul.f32 %v159, %v133
    %v176 = vmul.f32 %v159, %v134
    %v177 = vmul.f32 %v159, %v135
    %v178 = vmul.f32 %v159, %v136
    %v179 = vmul.f32 %v159, %v137
    %v180 = vmul.f32 %v159, %v138
    %v181 = vmul.f32 %v159, %v139
    %v182 = vmul.f32 %v164, %v140
    %v183 = vmul.f32 %v164, %v141
    %v184 = vmul.f32 %v164, %v142
    %v185 = vmul.f32 %v164, %v143
    %v186 = vmul.f32 %v164, %v144
    %v187 = vmul.f32 %v164, %v145
    %v188 = vmul.f32 %v164, %v146
    %v189 = vmul.f32 %v164, %v147
    %v190 = vmul.f32 %v164, %v148
    %v191 = vmul.f32 %v164, %v149
    %v192 = vmul.f32 %v164, %v150
    %v193 = vmul.f32 %v164, %v151
    %v194 = vmul.f32 %v164, %v152
    %v195 = vmul.f32 %v164, %v153
    %v196 = vmul.f32 %v164, %v154
    %v197 = vmul.f32 %v164, %v155
    %v198 = vadd.f32 %v90, %v166
    %v199 = vadd.f32 %v91, %v167
    %v200 = vadd.f32 %v92, %v168
    %v201 = vadd.f32 %v93, %v169
    %v202 = vadd.f32 %v94, %v170
    %v203 = vadd.f32 %v95, %v171
    %v204 = vadd.f32 %v96, %v172
    %v205 = vadd.f32 %v97, %v173
    %v206 = vadd.f32 %v98, %v174
    %v207 = vadd.f32 %v99, %v175
    %v208 = vadd.f32 %v100, %v176
    %v209 = vadd.f32 %v101, %v177
    %v210 = vadd.f32 %v102, %v178
    %v211 = vadd.f32 %v103, %v179
    %v212 = vadd.f32 %v104, %v180
    %v213 = vadd.f32 %v105, %v181
    %v214 = vadd.f32 %v106, %v182
    %v215 = vadd.f32 %v107, %v183
    %v216 = vadd.f32 %v108, %v184
    %v217 = vadd.f32 %v109, %v185
    %v218 = vadd.f32 %v110, %v186
    %v219 = vadd.f32 %v111, %v187
    %v220 = vadd.f32 %v112, %v188
    %v221 = vadd.f32 %v113, %v189
    %v222 = vadd.f32 %v114, %v190
    %v223 = vadd.f32 %v115, %v191
    %v224 = vadd.f32 %v116, %v192
    %v225 = vadd.f32 %v117, %v193
    %v226 = vadd.f32 %v118, %v194
    %v227 = vadd.f32 %v119, %v195
    %v228 = vadd.f32 %v120, %v196
    %v229 = vadd.f32 %v121, %v197
    %230 = vst [vmem:[#allocation7] sm:$0xff] %v198
    %231 = vst [vmem:[#allocation7 + $0x8] sm:$0xff] %v199
    %232 = vst [vmem:[#allocation7 + $0x10] sm:$0xff] %v200
    %233 = vst [vmem:[#allocation7 + $0x18] sm:$0xff] %v201
    %234 = vst [vmem:[#allocation7 + $0x20] sm:$0xff] %v202
    %235 = vst [vmem:[#allocation7 + $0x28] sm:$0xff] %v203
    %236 = vst [vmem:[#allocation7 + $0x30] sm:$0xff] %v204
    %237 = vst [vmem:[#allocation7 + $0x38] sm:$0xff] %v205
    %238 = vst [vmem:[#allocation7 + $0x40] sm:$0xff] %v206
    %239 = vst [vmem:[#allocation7 + $0x48] sm:$0xff] %v207
    %240 = vst [vmem:[#allocation7 + $0x50] sm:$0xff] %v208
    %241 = vst [vmem:[#allocation7 + $0x58] sm:$0xff] %v209
    %242 = vst [vmem:[#allocation7 + $0x60] sm:$0xff] %v210
    %243 = vst [vmem:[#allocation7 + $0x68] sm:$0xff] %v211
    %244 = vst [vmem:[#allocation7 + $0x70] sm:$0xff] %v212
    %245 = vst [vmem:[#allocation7 + $0x78] sm:$0xff] %v213
    %246 = vst [vmem:[#allocation7 + $0x80] sm:$0xf] %v214
    %247 = vst [vmem:[#allocation7 + $0x88] sm:$0xf] %v215
    %248 = vst [vmem:[#allocation7 + $0x90] sm:$0xf] %v216
    %249 = vst [vmem:[#allocation7 + $0x98] sm:$0xf] %v217
    %250 = vst [vmem:[#allocation7 + $0xa0] sm:$0xf] %v218
    %251 = vst [vmem:[#allocation7 + $0xa8] sm:$0xf] %v219
    %252 = vst [vmem:[#allocation7 + $0xb0] sm:$0xf] %v220
    %253 = vst [vmem:[#allocation7 + $0xb8] sm:$0xf] %v221
    %254 = vst [vmem:[#allocation7 + $0xc0] sm:$0xf] %v222
    %255 = vst [vmem:[#allocation7 + $0xc8] sm:$0xf] %v223
    %256 = vst [vmem:[#allocation7 + $0xd0] sm:$0xf] %v224
    %257 = vst [vmem:[#allocation7 + $0xd8] sm:$0xf] %v225
    %258 = vst [vmem:[#allocation7 + $0xe0] sm:$0xf] %v226
    %259 = vst [vmem:[#allocation7 + $0xe8] sm:$0xf] %v227
    %260 = vst [vmem:[#allocation7 + $0xf0] sm:$0xf] %v228
    %261 = vst [vmem:[#allocation7 + $0xf8] sm:$0xf] %v229
    // Predicated region
    $region26: #{tpu_custom_call.1} parent=1 // pred_check
      _
    $region27: #{tpu_custom_call.1} parent=1 // pred_check_branch
      %263 = sbr.rel (0) target = $region29
    $region28: #{tpu_custom_call.1} parent=1 // pred_region
      %s265 = ssub.s32 4096, 4096
      %266 = vsyncadd [#allocation4], %s265
      %s267 = sshll.u32 [#allocation7], 4
      %s268 = int_to_ptr.vmem [resolvable:$true] %s267
      %273 = dma.vmem_to_hbm [thread:$0]  %s268, 4096, %s4, [#allocation4], 2048, 2048, 128
    $region29: #{tpu_custom_call.1} parent=1 // pred_fallthru
      _
    // Predicated region
    $region30: #{tpu_custom_call.1} parent=1 // pred_check
      _
    $region31: #{tpu_custom_call.1} parent=1 // pred_check_branch
      %275 = sbr.rel (0) target = $region33
    $region32: #{tpu_custom_call.1} parent=1 // pred_region
      %276 = dma.done [#allocation4], 4096
    $region33: #{tpu_custom_call.1} parent=1 // pred_fallthru
      _
    %277 = vsyncpa [#allocation3], 1
    %278 = vsyncpa [#allocation6], 1
    %279 = vsyncpa [#allocation4], 1

</llo_original>
